<compile_context>
chip_gen: v5e
topology: v5e:2x2
jax: 0.10.0
libtpu: 0.0.40
codegen_flags: <defaults>
</compile_context>

<pallas_src>
import jax
import jax.numpy as jnp
from jax.experimental import pallas as pl
from jax.experimental.pallas import tpu as pltpu


def din_attention_kernel(t_ref, h_ref, m_ref, w1t_ref, w1hth_ref,
                         b1_ref, w2_ref, b2_ref, o_ref):
    # t_ref: (bb, E), h_ref: (bb, L, E), m_ref: (bb, L)
    # w1t_ref: (E, U), w1hth_ref: (2E, U), b1_ref: (1, U)
    # w2_ref: (1, U), b2_ref: (1,) in SMEM, o_ref: (bb, E)
    bb, L, E = h_ref.shape
    U = w1t_ref.shape[1]

    t = t_ref[...]                                    # (bb, E)    compute dtype
    h = h_ref[...]                                    # (bb, L, E) compute dtype

    # ---- Layer 1 (folded concat weights), f32 accumulation on the MXU ----
    # cat([t, h, t-h, t*h]) @ W1 == t @ (W1a+W1c) + [h | t*h] @ [[W1b-W1c],[W1d]]
    zt = jnp.dot(t, w1t_ref[...],
                 preferred_element_type=jnp.float32)              # (bb, U)

    lhs = jnp.concatenate([h, t[:, None, :] * h], axis=-1)        # (bb, L, 2E)
    z = jnp.dot(lhs.reshape(bb * L, 2 * E), w1hth_ref[...],
                preferred_element_type=jnp.float32)               # (bb*L, U)

    z1 = (z + b1_ref[...].astype(jnp.float32)).reshape(bb, L, U) \
        + zt[:, None, :]
    z1 = jnp.maximum(z1, 0.0)                                     # ReLU

    # ---- Layer 2 (U -> 1): VPU multiply + lane reduce (U=32 underfills MXU) --
    w2v = w2_ref[...].astype(jnp.float32).reshape(1, 1, U)
    attw = jnp.sum(z1 * w2v, axis=-1) + b2_ref[0]                 # (bb, L)

    # attention_weight * mask
    attw = attw * m_ref[...].astype(jnp.float32)

    # ---- Weighted sum over L: only a (bb, E) f32 accumulator stays live ----
    out = jnp.zeros((bb, E), dtype=jnp.float32)
    if L <= 32:
        # Fully unrolled with static slices (free addressing, LLO visibility).
        for l in range(L):
            out = out + attw[:, l:l + 1] * h_ref[:, l, :].astype(jnp.float32)
    else:
        def body(l, acc):
            hl = h_ref[:, pl.ds(l, 1), :].reshape(bb, E).astype(jnp.float32)
            aw = jax.lax.dynamic_slice_in_dim(attw, l, 1, axis=1)   # (bb, 1)
            return acc + aw * hl
        out = jax.lax.fori_loop(0, L, body, out)

    o_ref[...] = out.astype(o_ref.dtype)


def _vmem_capacity_bytes():
    """Best-effort per-core VMEM capacity; conservative fallback (v7x: 64MiB)."""
    try:
        cap = getattr(pltpu.get_tpu_info(), "vmem_capacity_bytes", None)
        if cap:
            return int(cap)
    except Exception:
        pass
    return 64 * 1024 * 1024


def din_attention(target_item, history_sequence, mask, w1, b1, w2, b2, *,
                  compute_dtype=jnp.bfloat16, block_b=None,
                  vmem_limit_bytes=None):
    B, L, E = history_sequence.shape
    U = w1.shape[1]
    out_dtype = target_item.dtype

    # Fold the 4-way concat into two weight blocks (exact in real arithmetic):
    #   cat([t, h, t-h, t*h], -1) @ W1
    #     = t @ (W1a + W1c) + [h | t*h] @ vstack(W1b - W1c, W1d)
    w1f = w1.astype(jnp.float32)
    w1a, w1b, w1c, w1d = w1f[:E], w1f[E:2 * E], w1f[2 * E:3 * E], w1f[3 * E:]
    w1_t = (w1a + w1c).astype(compute_dtype)                            # (E, U)
    w1_hth = jnp.concatenate([w1b - w1c, w1d], axis=0).astype(compute_dtype)  # (2E, U)

    b1_row = b1.reshape(1, U).astype(jnp.float32)
    w2_row = w2.reshape(1, U).astype(jnp.float32)     # lane-aligned (1, U)
    b2_s = b2.reshape(1).astype(jnp.float32)          # SMEM scalar

    t_c = target_item.astype(compute_dtype)
    h_c = history_sequence.astype(compute_dtype)
    m_f = mask.astype(jnp.float32)

    # ---- generation-aware batch tile ----
    vmem_cap = _vmem_capacity_bytes()
    if vmem_cap >= 100 * 1024 * 1024:                 # v5e / v6e (128 MiB VMEM)
        tile_target, default_vmem_limit = 12 * 1024 * 1024, 96 * 1024 * 1024
    else:                                             # v7x (64 MiB per TC)
        tile_target, default_vmem_limit = 6 * 1024 * 1024, 48 * 1024 * 1024

    if block_b is None:
        row_bytes = L * E * jnp.dtype(compute_dtype).itemsize
        bb = max(1, tile_target // max(1, row_bytes))
        # Keep >= ~4 grid steps when B allows: megacore sharding on v7x and a
        # real software pipeline everywhere.
        bb = min(bb, max(1, -(-B // 4)))
        if bb < B:
            bb = max(8, (bb // 8) * 8)                # sublane-aligned tiles
        bb = min(bb, B)
    else:
        bb = block_b

    if vmem_limit_bytes is None:
        vmem_limit_bytes = default_vmem_limit

    return pl.pallas_call(
        din_attention_kernel,
        out_shape=jax.ShapeDtypeStruct((B, E), out_dtype),
        grid_spec=pl.GridSpec(
            grid=(pl.cdiv(B, bb),),
            in_specs=[
                pl.BlockSpec((bb, E), lambda i: (i, 0)),            # target
                pl.BlockSpec((bb, L, E), lambda i: (i, 0, 0)),      # history
                pl.BlockSpec((bb, L), lambda i: (i, 0)),            # mask
                pl.BlockSpec((E, U), lambda i: (0, 0)),             # W1_t
                pl.BlockSpec((2 * E, U), lambda i: (0, 0)),         # W1_[h|t*h]
                pl.BlockSpec((1, U), lambda i: (0, 0)),             # b1
                pl.BlockSpec((1, U), lambda i: (0, 0)),             # W2 row
                pl.BlockSpec(memory_space=pltpu.MemorySpace.SMEM),  # b2 scalar
            ],
            out_specs=pl.BlockSpec((bb, E), lambda i: (i, 0)),
        ),
        compiler_params=pltpu.CompilerParams(
            dimension_semantics=("parallel",),
            vmem_limit_bytes=vmem_limit_bytes),
    )(t_c, h_c, m_f, w1_t, w1_hth, b1_row, w2_row, b2_s)


def din_attention_ref(target_item, history_sequence, mask, w1, b1, w2, b2):
    """Pure-JAX f32 reference mirroring the PyTorch forward."""
    B, L, E = history_sequence.shape
    t = jnp.broadcast_to(target_item[:, None, :], (B, L, E))
    attn_in = jnp.concatenate(
        [t, history_sequence, t - history_sequence, t * history_sequence],
        axis=-1).reshape(-1, 4 * E)
    z1 = jnp.maximum(attn_in @ w1 + b1[0], 0.0)
    attw = (z1 @ w2 + b2[0]).reshape(B, L)
    attw = attw * mask
    return jnp.sum(attw[:, :, None] * history_sequence, axis=1)


if __name__ == "__main__":
    # Small shapes: batch=2, seq=8, embedding_dim=64, attention_units=[32]
    B, L, E, U = 2, 8, 64, 32

    key = jax.random.PRNGKey(0)
    k_t, k_h, k_m, k_w1, k_b1, k_w2, k_b2 = jax.random.split(key, 7)

    target = jax.random.normal(k_t, (B, E), dtype=jnp.float32)
    history = jax.random.normal(k_h, (B, L, E), dtype=jnp.float32)
    mask = (jax.random.uniform(k_m, (B, L)) > 0.2).astype(jnp.float32)

    # Synthetic parameters (shapes from __init__: Linear(4E,U) -> ReLU -> Linear(U,1)).
    w1 = jax.random.uniform(k_w1, (4 * E, U), minval=-0.0625, maxval=0.0625,
                            dtype=jnp.float32)
    b1 = jax.random.uniform(k_b1, (1, U), minval=-0.0625, maxval=0.0625,
                            dtype=jnp.float32)
    w2 = jax.random.uniform(k_w2, (U, 1), minval=-0.176, maxval=0.176,
                            dtype=jnp.float32)
    b2 = jax.random.uniform(k_b2, (1, 1), minval=-0.176, maxval=0.176,
                            dtype=jnp.float32)

    # TODO(synk): use_cope=True (CAPE position encoding) and use_softmax=True
    # branches are not exercised with the default constructor args.

    out = din_attention(target, history, mask, w1, b1, w2, b2)  # bf16 compute
    out = jax.block_until_ready(out)

    ref = din_attention_ref(target, history, mask, w1, b1, w2, b2)
    assert out.shape == (B, E)
    # bf16 inputs / f32 accumulation: loose tolerance vs. the f32 reference.
    assert jnp.allclose(out, ref, rtol=2e-2, atol=2e-2), "mismatch vs reference"

    print("KERNEL_OK")
</pallas_src>

<mosaic_0001>
module attributes {stable_mosaic.version = 11 : i64} {
  func.func @din_attention_kernel(%arg0: i32, %arg1: memref<2x64xbf16, #tpu.memory_space<vmem>>, %arg2: memref<2x8x64xbf16, #tpu.memory_space<vmem>>, %arg3: memref<2x8xf32, #tpu.memory_space<vmem>>, %arg4: memref<64x32xbf16, #tpu.memory_space<vmem>>, %arg5: memref<128x32xbf16, #tpu.memory_space<vmem>>, %arg6: memref<1x32xf32, #tpu.memory_space<vmem>>, %arg7: memref<1x32xf32, #tpu.memory_space<vmem>>, %arg8: memref<1xf32, #tpu.memory_space<smem>>, %arg9: memref<2x64xf32, #tpu.memory_space<vmem>>) attributes {dimension_semantics = [#tpu.dimension_semantics<parallel>], iteration_bounds = array<i64: 1>, scalar_prefetch = 0 : i64, scratch_operands = 0 : i64, tpu.core_type = #tpu.core_type<tc>, window_params = [{transform_indices = @transform_0, window_bounds = array<i64: 2, 64>}, {transform_indices = @transform_1, window_bounds = array<i64: 2, 8, 64>}, {transform_indices = @transform_2, window_bounds = array<i64: 2, 8>}, {pipeline_mode = #tpu.pipeline_mode<synchronous>, transform_indices = @transform_3, window_bounds = array<i64: 64, 32>}, {pipeline_mode = #tpu.pipeline_mode<synchronous>, transform_indices = @transform_4, window_bounds = array<i64: 128, 32>}, {pipeline_mode = #tpu.pipeline_mode<synchronous>, transform_indices = @transform_5, window_bounds = array<i64: 1, 32>}, {pipeline_mode = #tpu.pipeline_mode<synchronous>, transform_indices = @transform_6, window_bounds = array<i64: 1, 32>}, {transform_indices = @transform_7, window_bounds = array<i64: 1>}, {transform_indices = @transform_8, window_bounds = array<i64: 2, 64>}]} {
    %c0 = arith.constant 0 : index
    %c0_0 = arith.constant 0 : index
    %0 = vector.load %arg1[%c0, %c0_0] : memref<2x64xbf16, #tpu.memory_space<vmem>>, vector<2x64xbf16>
    %c0_1 = arith.constant 0 : index
    %c0_2 = arith.constant 0 : index
    %c0_3 = arith.constant 0 : index
    %1 = vector.load %arg2[%c0_1, %c0_2, %c0_3] : memref<2x8x64xbf16, #tpu.memory_space<vmem>>, vector<2x8x64xbf16>
    %c0_4 = arith.constant 0 : index
    %c0_5 = arith.constant 0 : index
    %2 = vector.load %arg4[%c0_4, %c0_5] : memref<64x32xbf16, #tpu.memory_space<vmem>>, vector<64x32xbf16>
    %cst = arith.constant dense<0.000000e+00> : vector<2x32xf32>
    %3 = tpu.matmul %0, %2, %cst {dimension_numbers = #tpu.dot_dimension_numbers<[1], [0], [0], [1], [0, 0, 1, 1], [], []>} : vector<2x64xbf16>, vector<64x32xbf16>, vector<2x32xf32> -> vector<2x32xf32>
    %4 = vector.shape_cast %0 : vector<2x64xbf16> to vector<2x1x64xbf16>
    %5 = vector.broadcast %4 : vector<2x1x64xbf16> to vector<2x8x64xbf16>
    %6 = arith.mulf %5, %1 : vector<2x8x64xbf16>
    %7 = tpu.concatenate %1, %6 in 2 : vector<2x8x64xbf16>, vector<2x8x64xbf16> -> vector<2x8x128xbf16>
    %8 = vector.shape_cast %7 : vector<2x8x128xbf16> to vector<16x128xbf16>
    %c0_6 = arith.constant 0 : index
    %c0_7 = arith.constant 0 : index
    %9 = vector.load %arg5[%c0_6, %c0_7] : memref<128x32xbf16, #tpu.memory_space<vmem>>, vector<128x32xbf16>
    %cst_8 = arith.constant dense<0.000000e+00> : vector<16x32xf32>
    %10 = tpu.matmul %8, %9, %cst_8 {dimension_numbers = #tpu.dot_dimension_numbers<[1], [0], [0], [1], [0, 0, 1, 1], [], []>} : vector<16x128xbf16>, vector<128x32xbf16>, vector<16x32xf32> -> vector<16x32xf32>
    %c0_9 = arith.constant 0 : index
    %c0_10 = arith.constant 0 : index
    %11 = vector.load %arg6[%c0_9, %c0_10] : memref<1x32xf32, #tpu.memory_space<vmem>>, vector<1x32xf32>
    %12 = vector.broadcast %11 : vector<1x32xf32> to vector<16x32xf32>
    %13 = arith.addf %10, %12 : vector<16x32xf32>
    %14 = vector.shape_cast %13 : vector<16x32xf32> to vector<2x8x32xf32>
    %15 = vector.shape_cast %3 : vector<2x32xf32> to vector<2x1x32xf32>
    %16 = vector.broadcast %15 : vector<2x1x32xf32> to vector<2x8x32xf32>
    %17 = arith.addf %14, %16 : vector<2x8x32xf32>
    %cst_11 = arith.constant 0.000000e+00 : f32
    %18 = vector.broadcast %cst_11 : f32 to vector<2x8x32xf32>
    %19 = arith.maximumf %17, %18 : vector<2x8x32xf32>
    %c0_12 = arith.constant 0 : index
    %c0_13 = arith.constant 0 : index
    %20 = vector.load %arg7[%c0_12, %c0_13] : memref<1x32xf32, #tpu.memory_space<vmem>>, vector<1x32xf32>
    %21 = vector.shape_cast %20 : vector<1x32xf32> to vector<1x1x32xf32>
    %22 = vector.broadcast %21 : vector<1x1x32xf32> to vector<2x8x32xf32>
    %23 = arith.mulf %19, %22 : vector<2x8x32xf32>
    %cst_14 = arith.constant dense<0.000000e+00> : vector<2x8xf32>
    %24 = vector.multi_reduction <add>, %23, %cst_14 [2] : vector<2x8x32xf32> to vector<2x8xf32>
    %c0_15 = arith.constant 0 : index
    %25 = memref.load %arg8[%c0_15] : memref<1xf32, #tpu.memory_space<smem>>
    %26 = vector.broadcast %25 : f32 to vector<2x8xf32>
    %27 = arith.addf %24, %26 : vector<2x8xf32>
    %c0_16 = arith.constant 0 : index
    %c0_17 = arith.constant 0 : index
    %28 = vector.load %arg3[%c0_16, %c0_17] : memref<2x8xf32, #tpu.memory_space<vmem>>, vector<2x8xf32>
    %29 = arith.mulf %27, %28 : vector<2x8xf32>
    %cst_18 = arith.constant 0.000000e+00 : f32
    %30 = vector.broadcast %cst_18 : f32 to vector<2x64xf32>
    %31 = vector.extract_strided_slice %29 {offsets = [0, 0], sizes = [2, 1], strides = [1, 1]} : vector<2x8xf32> to vector<2x1xf32>
    %c0_19 = arith.constant 0 : index
    %c0_20 = arith.constant 0 : index
    %c0_21 = arith.constant 0 : index
    %32 = vector.load %arg2[%c0_19, %c0_20, %c0_21] : memref<2x8x64xbf16, #tpu.memory_space<vmem>>, vector<2x1x64xbf16>
    %33 = vector.shape_cast %32 : vector<2x1x64xbf16> to vector<2x64xbf16>
    %34 = arith.extf %33 : vector<2x64xbf16> to vector<2x64xf32>
    %35 = vector.broadcast %31 : vector<2x1xf32> to vector<2x64xf32>
    %36 = arith.mulf %35, %34 : vector<2x64xf32>
    %37 = arith.addf %30, %36 : vector<2x64xf32>
    %38 = vector.extract_strided_slice %29 {offsets = [0, 1], sizes = [2, 1], strides = [1, 1]} : vector<2x8xf32> to vector<2x1xf32>
    %c0_22 = arith.constant 0 : index
    %c1 = arith.constant 1 : index
    %c0_23 = arith.constant 0 : index
    %39 = vector.load %arg2[%c0_22, %c1, %c0_23] : memref<2x8x64xbf16, #tpu.memory_space<vmem>>, vector<2x1x64xbf16>
    %40 = vector.shape_cast %39 : vector<2x1x64xbf16> to vector<2x64xbf16>
    %41 = arith.extf %40 : vector<2x64xbf16> to vector<2x64xf32>
    %42 = vector.broadcast %38 : vector<2x1xf32> to vector<2x64xf32>
    %43 = arith.mulf %42, %41 : vector<2x64xf32>
    %44 = arith.addf %37, %43 : vector<2x64xf32>
    %45 = vector.extract_strided_slice %29 {offsets = [0, 2], sizes = [2, 1], strides = [1, 1]} : vector<2x8xf32> to vector<2x1xf32>
    %c0_24 = arith.constant 0 : index
    %c2 = arith.constant 2 : index
    %c0_25 = arith.constant 0 : index
    %46 = vector.load %arg2[%c0_24, %c2, %c0_25] : memref<2x8x64xbf16, #tpu.memory_space<vmem>>, vector<2x1x64xbf16>
    %47 = vector.shape_cast %46 : vector<2x1x64xbf16> to vector<2x64xbf16>
    %48 = arith.extf %47 : vector<2x64xbf16> to vector<2x64xf32>
    %49 = vector.broadcast %45 : vector<2x1xf32> to vector<2x64xf32>
    %50 = arith.mulf %49, %48 : vector<2x64xf32>
    %51 = arith.addf %44, %50 : vector<2x64xf32>
    %52 = vector.extract_strided_slice %29 {offsets = [0, 3], sizes = [2, 1], strides = [1, 1]} : vector<2x8xf32> to vector<2x1xf32>
    %c0_26 = arith.constant 0 : index
    %c3 = arith.constant 3 : index
    %c0_27 = arith.constant 0 : index
    %53 = vector.load %arg2[%c0_26, %c3, %c0_27] : memref<2x8x64xbf16, #tpu.memory_space<vmem>>, vector<2x1x64xbf16>
    %54 = vector.shape_cast %53 : vector<2x1x64xbf16> to vector<2x64xbf16>
    %55 = arith.extf %54 : vector<2x64xbf16> to vector<2x64xf32>
    %56 = vector.broadcast %52 : vector<2x1xf32> to vector<2x64xf32>
    %57 = arith.mulf %56, %55 : vector<2x64xf32>
    %58 = arith.addf %51, %57 : vector<2x64xf32>
    %59 = vector.extract_strided_slice %29 {offsets = [0, 4], sizes = [2, 1], strides = [1, 1]} : vector<2x8xf32> to vector<2x1xf32>
    %c0_28 = arith.constant 0 : index
    %c4 = arith.constant 4 : index
    %c0_29 = arith.constant 0 : index
    %60 = vector.load %arg2[%c0_28, %c4, %c0_29] : memref<2x8x64xbf16, #tpu.memory_space<vmem>>, vector<2x1x64xbf16>
    %61 = vector.shape_cast %60 : vector<2x1x64xbf16> to vector<2x64xbf16>
    %62 = arith.extf %61 : vector<2x64xbf16> to vector<2x64xf32>
    %63 = vector.broadcast %59 : vector<2x1xf32> to vector<2x64xf32>
    %64 = arith.mulf %63, %62 : vector<2x64xf32>
    %65 = arith.addf %58, %64 : vector<2x64xf32>
    %66 = vector.extract_strided_slice %29 {offsets = [0, 5], sizes = [2, 1], strides = [1, 1]} : vector<2x8xf32> to vector<2x1xf32>
    %c0_30 = arith.constant 0 : index
    %c5 = arith.constant 5 : index
    %c0_31 = arith.constant 0 : index
    %67 = vector.load %arg2[%c0_30, %c5, %c0_31] : memref<2x8x64xbf16, #tpu.memory_space<vmem>>, vector<2x1x64xbf16>
    %68 = vector.shape_cast %67 : vector<2x1x64xbf16> to vector<2x64xbf16>
    %69 = arith.extf %68 : vector<2x64xbf16> to vector<2x64xf32>
    %70 = vector.broadcast %66 : vector<2x1xf32> to vector<2x64xf32>
    %71 = arith.mulf %70, %69 : vector<2x64xf32>
    %72 = arith.addf %65, %71 : vector<2x64xf32>
    %73 = vector.extract_strided_slice %29 {offsets = [0, 6], sizes = [2, 1], strides = [1, 1]} : vector<2x8xf32> to vector<2x1xf32>
    %c0_32 = arith.constant 0 : index
    %c6 = arith.constant 6 : index
    %c0_33 = arith.constant 0 : index
    %74 = vector.load %arg2[%c0_32, %c6, %c0_33] : memref<2x8x64xbf16, #tpu.memory_space<vmem>>, vector<2x1x64xbf16>
    %75 = vector.shape_cast %74 : vector<2x1x64xbf16> to vector<2x64xbf16>
    %76 = arith.extf %75 : vector<2x64xbf16> to vector<2x64xf32>
    %77 = vector.broadcast %73 : vector<2x1xf32> to vector<2x64xf32>
    %78 = arith.mulf %77, %76 : vector<2x64xf32>
    %79 = arith.addf %72, %78 : vector<2x64xf32>
    %80 = vector.extract_strided_slice %29 {offsets = [0, 7], sizes = [2, 1], strides = [1, 1]} : vector<2x8xf32> to vector<2x1xf32>
    %c0_34 = arith.constant 0 : index
    %c7 = arith.constant 7 : index
    %c0_35 = arith.constant 0 : index
    %81 = vector.load %arg2[%c0_34, %c7, %c0_35] : memref<2x8x64xbf16, #tpu.memory_space<vmem>>, vector<2x1x64xbf16>
    %82 = vector.shape_cast %81 : vector<2x1x64xbf16> to vector<2x64xbf16>
    %83 = arith.extf %82 : vector<2x64xbf16> to vector<2x64xf32>
    %84 = vector.broadcast %80 : vector<2x1xf32> to vector<2x64xf32>
    %85 = arith.mulf %84, %83 : vector<2x64xf32>
    %86 = arith.addf %79, %85 : vector<2x64xf32>
    %c0_36 = arith.constant 0 : index
    %c0_37 = arith.constant 0 : index
    %87 = vector.load %arg9[%c0_36, %c0_37] : memref<2x64xf32, #tpu.memory_space<vmem>>, vector<2x64xf32>
    tpu.vector_store %arg9[%c0_36, %c0_37], %86 {strides = array<i32>} : memref<2x64xf32, #tpu.memory_space<vmem>>, vector<2x64xf32>,
    return
  }
  func.func @transform_0(%arg0: i32) -> (i32, i32) {
    %c0_i32 = arith.constant 0 : i32
    %c0_i32_0 = arith.constant 0 : i32
    return %arg0, %c0_i32 : i32, i32
  }
  func.func @transform_1(%arg0: i32) -> (i32, i32, i32) {
    %c0_i32 = arith.constant 0 : i32
    %c0_i32_0 = arith.constant 0 : i32
    %c0_i32_1 = arith.constant 0 : i32
    return %arg0, %c0_i32, %c0_i32_0 : i32, i32, i32
  }
  func.func @transform_2(%arg0: i32) -> (i32, i32) {
    %c0_i32 = arith.constant 0 : i32
    %c0_i32_0 = arith.constant 0 : i32
    return %arg0, %c0_i32 : i32, i32
  }
  func.func @transform_3(%arg0: i32) -> (i32, i32) {
    %c0_i32 = arith.constant 0 : i32
    %c0_i32_0 = arith.constant 0 : i32
    %c0_i32_1 = arith.constant 0 : i32
    return %c0_i32, %c0_i32_0 : i32, i32
  }
  func.func @transform_4(%arg0: i32) -> (i32, i32) {
    %c0_i32 = arith.constant 0 : i32
    %c0_i32_0 = arith.constant 0 : i32
    %c0_i32_1 = arith.constant 0 : i32
    return %c0_i32, %c0_i32_0 : i32, i32
  }
  func.func @transform_5(%arg0: i32) -> (i32, i32) {
    %c0_i32 = arith.constant 0 : i32
    %c0_i32_0 = arith.constant 0 : i32
    %c0_i32_1 = arith.constant 0 : i32
    return %c0_i32, %c0_i32_0 : i32, i32
  }
  func.func @transform_6(%arg0: i32) -> (i32, i32) {
    %c0_i32 = arith.constant 0 : i32
    %c0_i32_0 = arith.constant 0 : i32
    %c0_i32_1 = arith.constant 0 : i32
    return %c0_i32, %c0_i32_0 : i32, i32
  }
  func.func @transform_7(%arg0: i32) -> i32 {
    %c0_i32 = arith.constant 0 : i32
    %c0_i32_0 = arith.constant 0 : i32
    return %c0_i32 : i32
  }
  func.func @transform_8(%arg0: i32) -> (i32, i32) {
    %c0_i32 = arith.constant 0 : i32
    %c0_i32_0 = arith.constant 0 : i32
    return %arg0, %c0_i32 : i32, i32
  }
}

</mosaic_0001>

<llo_original>
// kernel: tpu_custom_call.1
$region0: #{tpu_custom_call.1}
  #allocation0 [shape = 'u32[]', space=smem, size = 0x4, offset = 0x4, fixed_abs, tag = 'smem constant byte address 0x4 - core index']
  #allocation1 [shape = 'u32[72,128]{1,0:T(1,128)}', space=vmem, size = 0x9000, scoped, tag = 'internal scratch']
  #allocation2 [shape = 'f32[1]{0:T(128)S(6)}', space=smem, size = 0x200, scoped, tag = 'scoped memory for tpu_custom_call.1']
  %s0 = inlined_call_operand.vmem [shape: bf16[2,64], index: 0, kind: input, shape index: {}]
  %s1 = inlined_call_operand.vmem [shape: bf16[2,8,64], index: 1, kind: input, shape index: {}]
  %s2 = inlined_call_operand.vmem [shape: f32[2,8], index: 2, kind: input, shape index: {}]
  %s3 = inlined_call_operand.vmem [shape: bf16[64,32], index: 3, kind: input, shape index: {}]
  %s4 = inlined_call_operand.vmem [shape: bf16[128,32], index: 4, kind: input, shape index: {}]
  %s5 = inlined_call_operand.vmem [shape: f32[1,32], index: 5, kind: input, shape index: {}]
  %s6 = inlined_call_operand.vmem [shape: f32[1,32], index: 6, kind: input, shape index: {}]
  %s7 = inlined_call_operand.<no memory space> [shape: f32[1], index: 7, kind: input, shape index: {}]
  %s8 = inlined_call_operand.hbm [shape: f32[2,64], index: 8, kind: output, shape index: {}]
  %s9 = sld [smem:[#allocation0]]
  $region42: #{tpu_custom_call.1} parent=0
    _
  %s11 = ssub.s32 1, %s9
  %s12 = scalar_select 0, %s11, %s9
  %13 = sst [smem:[#allocation2]] %s7
  $region1: #{tpu_custom_call.1} parent=0
    #allocation3 [shape = 'u8[1024]{0}', space=vmem, size = 0x400, scoped, tag = 'output window, operand 0, single buffered']
    #allocation4 [shape = 's32[1]{0}', space=sflag, size = 0x4, scoped, tag = 'scoped memory for tpu_custom_call.1']
    %14 = vsyncpa [#allocation4], 0
    // Predicated region
    $region2: #{tpu_custom_call.1} parent=1 // pred_check
      _
    $region3: #{tpu_custom_call.1} parent=1 // pred_check_branch
      %16 = sbr.rel (0) target = $region5
    $region4: #{tpu_custom_call.1} parent=1 // pred_region
      _
    $region5: #{tpu_custom_call.1} parent=1 // pred_fallthru
      _
    // Predicated region
    $region6: #{tpu_custom_call.1} parent=1 // pred_check
      _
    $region7: #{tpu_custom_call.1} parent=1 // pred_check_branch
      %18 = sbr.rel (0) target = $region9
    $region8: #{tpu_custom_call.1} parent=1 // pred_region
      _
    $region9: #{tpu_custom_call.1} parent=1 // pred_fallthru
      _
    // Predicated region
    $region10: #{tpu_custom_call.1} parent=1 // pred_check
      _
    $region11: #{tpu_custom_call.1} parent=1 // pred_check_branch
      %20 = sbr.rel (0) target = $region13
    $region12: #{tpu_custom_call.1} parent=1 // pred_region
      _
    $region13: #{tpu_custom_call.1} parent=1 // pred_fallthru
      _
    // Predicated region
    $region14: #{tpu_custom_call.1} parent=1 // pred_check
      _
    $region15: #{tpu_custom_call.1} parent=1 // pred_check_branch
      %22 = sbr.rel (0) target = $region17
    $region16: #{tpu_custom_call.1} parent=1 // pred_region
      _
    $region17: #{tpu_custom_call.1} parent=1 // pred_fallthru
      _
    // Predicated region
    $region18: #{tpu_custom_call.1} parent=1 // pred_check
      _
    $region19: #{tpu_custom_call.1} parent=1 // pred_check_branch
      %24 = sbr.rel (0) target = $region21
    $region20: #{tpu_custom_call.1} parent=1 // pred_region
      _
    $region21: #{tpu_custom_call.1} parent=1 // pred_fallthru
      _
    // Predicated region
    $region22: #{tpu_custom_call.1} parent=1 // pred_check
      _
    $region23: #{tpu_custom_call.1} parent=1 // pred_check_branch
      %26 = sbr.rel (0) target = $region25
    $region24: #{tpu_custom_call.1} parent=1 // pred_region
      _
    $region25: #{tpu_custom_call.1} parent=1 // pred_fallthru
      _
    // Predicated region
    $region26: #{tpu_custom_call.1} parent=1 // pred_check
      _
    $region27: #{tpu_custom_call.1} parent=1 // pred_check_branch
      %28 = sbr.rel (0) target = $region29
    $region28: #{tpu_custom_call.1} parent=1 // pred_region
      _
    $region29: #{tpu_custom_call.1} parent=1 // pred_fallthru
      _
    // Predicated region
    $region30: #{tpu_custom_call.1} parent=1 // pred_check
      _
    $region31: #{tpu_custom_call.1} parent=1 // pred_check_branch
      %30 = sbr.rel (0) target = $region33
    $region32: #{tpu_custom_call.1} parent=1 // pred_region
      _
    $region33: #{tpu_custom_call.1} parent=1 // pred_fallthru
      _
    %v32 = vld [vmem:[%s0] sm:$0x1]
    %v33 = vld [vmem:[%s1] sm:$0xf]
    %v34 = vld [vmem:[%s1 + $0x4] sm:$0xf]
    %v35 = vld [vmem:[%s3] sm:$0xf]
    %v36 = vld [vmem:[%s3 + $0x4] sm:$0xf]
    %v37 = vld [vmem:[%s3 + $0x8] sm:$0xf]
    %v38 = vld [vmem:[%s3 + $0xc] sm:$0xf]
    %v39 = vld [vmem:[%s3 + $0x10] sm:$0xf]
    %v40 = vld [vmem:[%s3 + $0x14] sm:$0xf]
    %v41 = vld [vmem:[%s3 + $0x18] sm:$0xf]
    %v42 = vld [vmem:[%s3 + $0x1c] sm:$0xf]
    %v51 = vunpack.c.l.b16 %v35
    %v52 = vunpack.c.l.b16 %v36
    %v53 = vunpack.c.l.b16 %v37
    %v54 = vunpack.c.l.b16 %v38
    %v55 = vunpack.c.l.b16 %v39
    %v56 = vunpack.c.l.b16 %v40
    %v57 = vunpack.c.l.b16 %v41
    %v58 = vunpack.c.l.b16 %v42
    %v59 = vpack.c.b16 %v52, %v51
    %v60 = vpack.c.b16 %v54, %v53
    %v61 = vpack.c.b16 %v56, %v55
    %v62 = vpack.c.b16 %v58, %v57
    %vm67 = vcmask 523264
    %v69 = vsel %vm67, %v32, 0
    %71 = vmatpush.bf16.msra.mxu0 0
    %72 = vmatpush.bf16.msra.mxu0 0
    %73 = vmatpush.bf16.msra.mxu0 0
    %74 = vmatpush.bf16.msra.mxu0 0
    %75 = vmatpush.bf16.msra.mxu0 %v62
    %76 = vmatpush.bf16.msra.mxu0 %v61
    %77 = vmatpush.bf16.msra.mxu0 %v60
    %78 = vmatpush.bf16.msra.mxu0 %v59
    %79 = vmatmul.bf16.gmra.mxu0 %v69
    %v80 = vpop.f32.mrf.mxu0
    %v81 = vadd.f32 0.0, %v80
    %v82 = vpop.f32.mrf.mxu0
    %83 = vdwg.mxu0
    %v85 = vunpack.i.l.s16 %v32
    %v86 = vunpack.i.h.s16 %v32
    %v87 = vpack.i.b16 %v85, %v85
    %v88 = vpack.i.b16 %v86, %v86
    %v89 = vperm.slane %v87, 0
    %v90 = vperm.slane %v88, 0
    %v92 = vpack.i.b16 %v89, %v89
    %v94 = vperm.slane %v92, 0
    %v96 = vpack.i.b16 %v90, %v90
    %v98 = vperm.slane %v96, 0
    %v99 = vunpack.c.l.bf16 %v94
    %v100 = vunpack.c.l.bf16 %v98
    %v101 = vunpack.c.l.bf16 %v33
    %v102 = vunpack.c.l.bf16 %v34
    %v103 = vmul.f32 %v99, %v101
    %v104 = vmul.f32 %v100, %v102
    %v105 = vpack.c.bf16 %v103, %v103
    %v106 = vpack.c.bf16 %v104, %v104
    %v109 = vunpack.c.l.b16 %v105
    %v110 = vunpack.c.l.b16 %v106
    %v111 = vpack.c.b16 %v109, %v109
    %v112 = vpack.c.b16 %v110, %v110
    %113 = vrot.lane.b32.xlu0 %v111, 64
    %v114 = vpop.permute.xlu0 %113
    %115 = vrot.lane.b32.xlu0 %v112, 64
    %v116 = vpop.permute.xlu0 %115
    %v119 = vsel %vm67, %v33, %v114
    %v122 = vsel %vm67, %v34, %v116
    %v123 = vld [vmem:[%s4] sm:$0xf]
    %v124 = vld [vmem:[%s4 + $0x4] sm:$0xf]
    %v125 = vld [vmem:[%s4 + $0x8] sm:$0xf]
    %v126 = vld [vmem:[%s4 + $0xc] sm:$0xf]
    %v127 = vld [vmem:[%s4 + $0x10] sm:$0xf]
    %v128 = vld [vmem:[%s4 + $0x14] sm:$0xf]
    %v129 = vld [vmem:[%s4 + $0x18] sm:$0xf]
    %v130 = vld [vmem:[%s4 + $0x1c] sm:$0xf]
    %v131 = vld [vmem:[%s4 + $0x20] sm:$0xf]
    %v132 = vld [vmem:[%s4 + $0x24] sm:$0xf]
    %v133 = vld [vmem:[%s4 + $0x28] sm:$0xf]
    %v134 = vld [vmem:[%s4 + $0x2c] sm:$0xf]
    %v135 = vld [vmem:[%s4 + $0x30] sm:$0xf]
    %v136 = vld [vmem:[%s4 + $0x34] sm:$0xf]
    %v137 = vld [vmem:[%s4 + $0x38] sm:$0xf]
    %v138 = vld [vmem:[%s4 + $0x3c] sm:$0xf]
    %v139 = vld [vmem:[%s5] sm:$0x1]
    %v141 = vperm.slane %v139, 0
    %v145 = vunpack.c.l.b16 %v119
    %v146 = vunpack.c.l.b16 %v122
    %v147 = vpack.c.b16 %v146, %v145
    %v165 = vunpack.c.l.b16 %v123
    %v166 = vunpack.c.l.b16 %v124
    %v167 = vunpack.c.l.b16 %v125
    %v168 = vunpack.c.l.b16 %v126
    %v169 = vunpack.c.l.b16 %v127
    %v170 = vunpack.c.l.b16 %v128
    %v171 = vunpack.c.l.b16 %v129
    %v172 = vunpack.c.l.b16 %v130
    %v173 = vunpack.c.l.b16 %v131
    %v174 = vunpack.c.l.b16 %v132
    %v175 = vunpack.c.l.b16 %v133
    %v176 = vunpack.c.l.b16 %v134
    %v177 = vunpack.c.l.b16 %v135
    %v178 = vunpack.c.l.b16 %v136
    %v179 = vunpack.c.l.b16 %v137
    %v180 = vunpack.c.l.b16 %v138
    %v181 = vpack.c.b16 %v166, %v165
    %v182 = vpack.c.b16 %v168, %v167
    %v183 = vpack.c.b16 %v170, %v169
    %v184 = vpack.c.b16 %v172, %v171
    %v185 = vpack.c.b16 %v174, %v173
    %v186 = vpack.c.b16 %v176, %v175
    %v187 = vpack.c.b16 %v178, %v177
    %v188 = vpack.c.b16 %v180, %v179
    %197 = vmatpush.bf16.msra.mxu0 %v188
    %198 = vmatpush.bf16.msra.mxu0 %v187
    %199 = vmatpush.bf16.msra.mxu0 %v186
    %200 = vmatpush.bf16.msra.mxu0 %v185
    %201 = vmatpush.bf16.msra.mxu0 %v184
    %202 = vmatpush.bf16.msra.mxu0 %v183
    %203 = vmatpush.bf16.msra.mxu0 %v182
    %204 = vmatpush.bf16.msra.mxu0 %v181
    %205 = vmatmul.bf16.gmra.mxu0 %v147
    %v206 = vpop.f32.mrf.mxu0
    %v207 = vadd.f32 %v141, %v206
    %v208 = vpop.f32.mrf.mxu0
    %v209 = vadd.f32 %v141, %v208
    %210 = vdwg.mxu0
    %v212 = vrot.slane %v81, 1
    %v213 = vperm.slane %v81, 0
    %v214 = vperm.slane %v212, 0
    %v217 = vadd.f32 %v207, %v213
    %v218 = vadd.f32 %v209, %v214
    %v219 = vmax.f32 %v217, 0.0
    %v220 = vmax.f32 %v218, 0.0
    %v221 = vld [vmem:[%s6] sm:$0x1]
    %v223 = vperm.slane %v221, 0
    %v225 = vmul.f32 %v219, %v223
    %v226 = vmul.f32 %v220, %v223
    %vm227 = vcmask 261120
    %v228 = vsel %vm227, %v225, 0.0
    %229 = vadd.xlane.f32.xlu0 %v228
    %v230 = vpop.xlane.xlu0 %229
    %v231 = vsel %vm227, %v226, 0.0
    %232 = vadd.xlane.f32.xlu0 %v231
    %v233 = vpop.xlane.xlu0 %232
    %s234 = sld [smem:[#allocation2]]
    %v235 = vstv %s234
    %v236 = vadd.f32 %v230, %v235
    %v237 = vadd.f32 %v233, %v235
    %v238 = vld [vmem:[%s2] sm:$0x3]
    %v240 = vperm.slane %v238, 0
    %v241 = vlaneseq
    %v242 = vshrl.u32 %v241, 7
    %244 = vset.pattern.permute.xlu0 %v242
    %245 = vperm.xlu0 %244, %v240
    %v246 = vpop.permute.xlu0 %245
    %v247 = vperm.slane %v238, 1
    %v248 = vlaneseq
    %v249 = vshrl.u32 %v248, 7
    %251 = vset.pattern.permute.xlu0 %v249
    %252 = vperm.xlu0 %251, %v247
    %v253 = vpop.permute.xlu0 %252
    %v256 = vmul.f32 %v236, %v246
    %v257 = vmul.f32 %v237, %v253
    %v258 = vld [vmem:[%s1] sm:$0x1]
    %v259 = vld [vmem:[%s1 + $0x4] sm:$0x1]
    %v260 = vunpack.c.l.bf16 %v258
    %v261 = vunpack.c.l.bf16 %v259
    %v262 = vperm.slane %v256, 0
    %v263 = vperm.slane %v257, 0
    %v266 = vperm.slane %v260, 0
    %v267 = vlaneseq
    %v268 = vshrl.u32 %v267, 7
    %270 = vset.pattern.permute.xlu0 %v268
    %271 = vperm.xlu0 %270, %v266
    %v272 = vpop.permute.xlu0 %271
    %v273 = vlaneseq
    %v274 = vshrl.u32 %v273, 7
    %v275 = vadd.s32 %v274, 8
    %276 = vset.pattern.permute.xlu0 %v275
    %277 = vperm.xlu0 %276, %v266
    %v278 = vpop.permute.xlu0 %277
    %v279 = vlaneseq
    %v280 = vshrl.u32 %v279, 7
    %v281 = vadd.s32 %v280, 16
    %282 = vset.pattern.permute.xlu0 %v281
    %283 = vperm.xlu0 %282, %v266
    %v284 = vpop.permute.xlu0 %283
    %v285 = vlaneseq
    %v286 = vshrl.u32 %v285, 7
    %v287 = vadd.s32 %v286, 24
    %288 = vset.pattern.permute.xlu0 %v287
    %289 = vperm.xlu0 %288, %v266
    %v290 = vpop.permute.xlu0 %289
    %v291 = vlaneseq
    %v292 = vshrl.u32 %v291, 7
    %v293 = vadd.s32 %v292, 32
    %294 = vset.pattern.permute.xlu0 %v293
    %295 = vperm.xlu0 %294, %v266
    %v296 = vpop.permute.xlu0 %295
    %v297 = vlaneseq
    %v298 = vshrl.u32 %v297, 7
    %v299 = vadd.s32 %v298, 40
    %300 = vset.pattern.permute.xlu0 %v299
    %301 = vperm.xlu0 %300, %v266
    %v302 = vpop.permute.xlu0 %301
    %v303 = vlaneseq
    %v304 = vshrl.u32 %v303, 7
    %v305 = vadd.s32 %v304, 48
    %306 = vset.pattern.permute.xlu0 %v305
    %307 = vperm.xlu0 %306, %v266
    %v308 = vpop.permute.xlu0 %307
    %v309 = vlaneseq
    %v310 = vshrl.u32 %v309, 7
    %v311 = vadd.s32 %v310, 56
    %312 = vset.pattern.permute.xlu0 %v311
    %313 = vperm.xlu0 %312, %v266
    %v314 = vpop.permute.xlu0 %313
    %v315 = vperm.slane %v261, 0
    %v316 = vlaneseq
    %v317 = vshrl.u32 %v316, 7
    %319 = vset.pattern.permute.xlu0 %v317
    %320 = vperm.xlu0 %319, %v315
    %v321 = vpop.permute.xlu0 %320
    %v322 = vlaneseq
    %v323 = vshrl.u32 %v322, 7
    %v324 = vadd.s32 %v323, 8
    %325 = vset.pattern.permute.xlu0 %v324
    %326 = vperm.xlu0 %325, %v315
    %v327 = vpop.permute.xlu0 %326
    %v328 = vlaneseq
    %v329 = vshrl.u32 %v328, 7
    %v330 = vadd.s32 %v329, 16
    %331 = vset.pattern.permute.xlu0 %v330
    %332 = vperm.xlu0 %331, %v315
    %v333 = vpop.permute.xlu0 %332
    %v334 = vlaneseq
    %v335 = vshrl.u32 %v334, 7
    %v336 = vadd.s32 %v335, 24
    %337 = vset.pattern.permute.xlu0 %v336
    %338 = vperm.xlu0 %337, %v315
    %v339 = vpop.permute.xlu0 %338
    %v340 = vlaneseq
    %v341 = vshrl.u32 %v340, 7
    %v342 = vadd.s32 %v341, 32
    %343 = vset.pattern.permute.xlu0 %v342
    %344 = vperm.xlu0 %343, %v315
    %v345 = vpop.permute.xlu0 %344
    %v346 = vlaneseq
    %v347 = vshrl.u32 %v346, 7
    %v348 = vadd.s32 %v347, 40
    %349 = vset.pattern.permute.xlu0 %v348
    %350 = vperm.xlu0 %349, %v315
    %v351 = vpop.permute.xlu0 %350
    %v352 = vlaneseq
    %v353 = vshrl.u32 %v352, 7
    %v354 = vadd.s32 %v353, 48
    %355 = vset.pattern.permute.xlu0 %v354
    %356 = vperm.xlu0 %355, %v315
    %v357 = vpop.permute.xlu0 %356
    %v358 = vlaneseq
    %v359 = vshrl.u32 %v358, 7
    %v360 = vadd.s32 %v359, 56
    %361 = vset.pattern.permute.xlu0 %v360
    %362 = vperm.xlu0 %361, %v315
    %v363 = vpop.permute.xlu0 %362
    %v380 = vmul.f32 %v262, %v272
    %v381 = vmul.f32 %v262, %v278
    %v382 = vmul.f32 %v262, %v284
    %v383 = vmul.f32 %v262, %v290
    %v384 = vmul.f32 %v262, %v296
    %v385 = vmul.f32 %v262, %v302
    %v386 = vmul.f32 %v262, %v308
    %v387 = vmul.f32 %v262, %v314
    %v388 = vmul.f32 %v263, %v321
    %v389 = vmul.f32 %v263, %v327
    %v390 = vmul.f32 %v263, %v333
    %v391 = vmul.f32 %v263, %v339
    %v392 = vmul.f32 %v263, %v345
    %v393 = vmul.f32 %v263, %v351
    %v394 = vmul.f32 %v263, %v357
    %v395 = vmul.f32 %v263, %v363
    %v396 = vadd.f32 %v380, 0.0
    %v397 = vadd.f32 %v381, 0.0
    %v398 = vadd.f32 %v382, 0.0
    %v399 = vadd.f32 %v383, 0.0
    %v400 = vadd.f32 %v384, 0.0
    %v401 = vadd.f32 %v385, 0.0
    %v402 = vadd.f32 %v386, 0.0
    %v403 = vadd.f32 %v387, 0.0
    %v404 = vadd.f32 %v388, 0.0
    %v405 = vadd.f32 %v389, 0.0
    %v406 = vadd.f32 %v390, 0.0
    %v407 = vadd.f32 %v391, 0.0
    %v408 = vadd.f32 %v392, 0.0
    %v409 = vadd.f32 %v393, 0.0
    %v410 = vadd.f32 %v394, 0.0
    %v411 = vadd.f32 %v395, 0.0
    %v412 = vperm.slane %v256, 1
    %v413 = vperm.slane %v257, 1
    %v414 = vperm.slane %v260, 1
    %v415 = vlaneseq
    %v416 = vshrl.u32 %v415, 7
    %418 = vset.pattern.permute.xlu0 %v416
    %419 = vperm.xlu0 %418, %v414
    %v420 = vpop.permute.xlu0 %419
    %v421 = vlaneseq
    %v422 = vshrl.u32 %v421, 7
    %v423 = vadd.s32 %v422, 8
    %424 = vset.pattern.permute.xlu0 %v423
    %425 = vperm.xlu0 %424, %v414
    %v426 = vpop.permute.xlu0 %425
    %v427 = vlaneseq
    %v428 = vshrl.u32 %v427, 7
    %v429 = vadd.s32 %v428, 16
    %430 = vset.pattern.permute.xlu0 %v429
    %431 = vperm.xlu0 %430, %v414
    %v432 = vpop.permute.xlu0 %431
    %v433 = vlaneseq
    %v434 = vshrl.u32 %v433, 7
    %v435 = vadd.s32 %v434, 24
    %436 = vset.pattern.permute.xlu0 %v435
    %437 = vperm.xlu0 %436, %v414
    %v438 = vpop.permute.xlu0 %437
    %v439 = vlaneseq
    %v440 = vshrl.u32 %v439, 7
    %v441 = vadd.s32 %v440, 32
    %442 = vset.pattern.permute.xlu0 %v441
    %443 = vperm.xlu0 %442, %v414
    %v444 = vpop.permute.xlu0 %443
    %v445 = vlaneseq
    %v446 = vshrl.u32 %v445, 7
    %v447 = vadd.s32 %v446, 40
    %448 = vset.pattern.permute.xlu0 %v447
    %449 = vperm.xlu0 %448, %v414
    %v450 = vpop.permute.xlu0 %449
    %v451 = vlaneseq
    %v452 = vshrl.u32 %v451, 7
    %v453 = vadd.s32 %v452, 48
    %454 = vset.pattern.permute.xlu0 %v453
    %455 = vperm.xlu0 %454, %v414
    %v456 = vpop.permute.xlu0 %455
    %v457 = vlaneseq
    %v458 = vshrl.u32 %v457, 7
    %v459 = vadd.s32 %v458, 56
    %460 = vset.pattern.permute.xlu0 %v459
    %461 = vperm.xlu0 %460, %v414
    %v462 = vpop.permute.xlu0 %461
    %v463 = vperm.slane %v261, 1
    %v464 = vlaneseq
    %v465 = vshrl.u32 %v464, 7
    %467 = vset.pattern.permute.xlu0 %v465
    %468 = vperm.xlu0 %467, %v463
    %v469 = vpop.permute.xlu0 %468
    %v470 = vlaneseq
    %v471 = vshrl.u32 %v470, 7
    %v472 = vadd.s32 %v471, 8
    %473 = vset.pattern.permute.xlu0 %v472
    %474 = vperm.xlu0 %473, %v463
    %v475 = vpop.permute.xlu0 %474
    %v476 = vlaneseq
    %v477 = vshrl.u32 %v476, 7
    %v478 = vadd.s32 %v477, 16
    %479 = vset.pattern.permute.xlu0 %v478
    %480 = vperm.xlu0 %479, %v463
    %v481 = vpop.permute.xlu0 %480
    %v482 = vlaneseq
    %v483 = vshrl.u32 %v482, 7
    %v484 = vadd.s32 %v483, 24
    %485 = vset.pattern.permute.xlu0 %v484
    %486 = vperm.xlu0 %485, %v463
    %v487 = vpop.permute.xlu0 %486
    %v488 = vlaneseq
    %v489 = vshrl.u32 %v488, 7
    %v490 = vadd.s32 %v489, 32
    %491 = vset.pattern.permute.xlu0 %v490
    %492 = vperm.xlu0 %491, %v463
    %v493 = vpop.permute.xlu0 %492
    %v494 = vlaneseq
    %v495 = vshrl.u32 %v494, 7
    %v496 = vadd.s32 %v495, 40
    %497 = vset.pattern.permute.xlu0 %v496
    %498 = vperm.xlu0 %497, %v463
    %v499 = vpop.permute.xlu0 %498
    %v500 = vlaneseq
    %v501 = vshrl.u32 %v500, 7
    %v502 = vadd.s32 %v501, 48
    %503 = vset.pattern.permute.xlu0 %v502
    %504 = vperm.xlu0 %503, %v463
    %v505 = vpop.permute.xlu0 %504
    %v506 = vlaneseq
    %v507 = vshrl.u32 %v506, 7
    %v508 = vadd.s32 %v507, 56
    %509 = vset.pattern.permute.xlu0 %v508
    %510 = vperm.xlu0 %509, %v463
    %v511 = vpop.permute.xlu0 %510
    %v528 = vmul.f32 %v412, %v420
    %v529 = vmul.f32 %v412, %v426
    %v530 = vmul.f32 %v412, %v432
    %v531 = vmul.f32 %v412, %v438
    %v532 = vmul.f32 %v412, %v444
    %v533 = vmul.f32 %v412, %v450
    %v534 = vmul.f32 %v412, %v456
    %v535 = vmul.f32 %v412, %v462
    %v536 = vmul.f32 %v413, %v469
    %v537 = vmul.f32 %v413, %v475
    %v538 = vmul.f32 %v413, %v481
    %v539 = vmul.f32 %v413, %v487
    %v540 = vmul.f32 %v413, %v493
    %v541 = vmul.f32 %v413, %v499
    %v542 = vmul.f32 %v413, %v505
    %v543 = vmul.f32 %v413, %v511
    %v544 = vadd.f32 %v396, %v528
    %v545 = vadd.f32 %v397, %v529
    %v546 = vadd.f32 %v398, %v530
    %v547 = vadd.f32 %v399, %v531
    %v548 = vadd.f32 %v400, %v532
    %v549 = vadd.f32 %v401, %v533
    %v550 = vadd.f32 %v402, %v534
    %v551 = vadd.f32 %v403, %v535
    %v552 = vadd.f32 %v404, %v536
    %v553 = vadd.f32 %v405, %v537
    %v554 = vadd.f32 %v406, %v538
    %v555 = vadd.f32 %v407, %v539
    %v556 = vadd.f32 %v408, %v540
    %v557 = vadd.f32 %v409, %v541
    %v558 = vadd.f32 %v410, %v542
    %v559 = vadd.f32 %v411, %v543
    %v560 = vld [vmem:[%s1] sm:$0x2]
    %v561 = vld [vmem:[%s1 + $0x4] sm:$0x2]
    %v562 = vunpack.c.l.bf16 %v560
    %v563 = vunpack.c.l.bf16 %v561
    %v564 = vperm.slane %v256, 2
    %v565 = vperm.slane %v257, 2
    %v568 = vperm.slane %v562, 2
    %v569 = vlaneseq
    %v570 = vshrl.u32 %v569, 7
    %572 = vset.pattern.permute.xlu0 %v570
    %573 = vperm.xlu0 %572, %v568
    %v574 = vpop.permute.xlu0 %573
    %v575 = vlaneseq
    %v576 = vshrl.u32 %v575, 7
    %v577 = vadd.s32 %v576, 8
    %578 = vset.pattern.permute.xlu0 %v577
    %579 = vperm.xlu0 %578, %v568
    %v580 = vpop.permute.xlu0 %579
    %v581 = vlaneseq
    %v582 = vshrl.u32 %v581, 7
    %v583 = vadd.s32 %v582, 16
    %584 = vset.pattern.permute.xlu0 %v583
    %585 = vperm.xlu0 %584, %v568
    %v586 = vpop.permute.xlu0 %585
    %v587 = vlaneseq
    %v588 = vshrl.u32 %v587, 7
    %v589 = vadd.s32 %v588, 24
    %590 = vset.pattern.permute.xlu0 %v589
    %591 = vperm.xlu0 %590, %v568
    %v592 = vpop.permute.xlu0 %591
    %v593 = vlaneseq
    %v594 = vshrl.u32 %v593, 7
    %v595 = vadd.s32 %v594, 32
    %596 = vset.pattern.permute.xlu0 %v595
    %597 = vperm.xlu0 %596, %v568
    %v598 = vpop.permute.xlu0 %597
    %v599 = vlaneseq
    %v600 = vshrl.u32 %v599, 7
    %v601 = vadd.s32 %v600, 40
    %602 = vset.pattern.permute.xlu0 %v601
    %603 = vperm.xlu0 %602, %v568
    %v604 = vpop.permute.xlu0 %603
    %v605 = vlaneseq
    %v606 = vshrl.u32 %v605, 7
    %v607 = vadd.s32 %v606, 48
    %608 = vset.pattern.permute.xlu0 %v607
    %609 = vperm.xlu0 %608, %v568
    %v610 = vpop.permute.xlu0 %609
    %v611 = vlaneseq
    %v612 = vshrl.u32 %v611, 7
    %v613 = vadd.s32 %v612, 56
    %614 = vset.pattern.permute.xlu0 %v613
    %615 = vperm.xlu0 %614, %v568
    %v616 = vpop.permute.xlu0 %615
    %v617 = vperm.slane %v563, 2
    %v618 = vlaneseq
    %v619 = vshrl.u32 %v618, 7
    %621 = vset.pattern.permute.xlu0 %v619
    %622 = vperm.xlu0 %621, %v617
    %v623 = vpop.permute.xlu0 %622
    %v624 = vlaneseq
    %v625 = vshrl.u32 %v624, 7
    %v626 = vadd.s32 %v625, 8
    %627 = vset.pattern.permute.xlu0 %v626
    %628 = vperm.xlu0 %627, %v617
    %v629 = vpop.permute.xlu0 %628
    %v630 = vlaneseq
    %v631 = vshrl.u32 %v630, 7
    %v632 = vadd.s32 %v631, 16
    %633 = vset.pattern.permute.xlu0 %v632
    %634 = vperm.xlu0 %633, %v617
    %v635 = vpop.permute.xlu0 %634
    %v636 = vlaneseq
    %v637 = vshrl.u32 %v636, 7
    %v638 = vadd.s32 %v637, 24
    %639 = vset.pattern.permute.xlu0 %v638
    %640 = vperm.xlu0 %639, %v617
    %v641 = vpop.permute.xlu0 %640
    %v642 = vlaneseq
    %v643 = vshrl.u32 %v642, 7
    %v644 = vadd.s32 %v643, 32
    %645 = vset.pattern.permute.xlu0 %v644
    %646 = vperm.xlu0 %645, %v617
    %v647 = vpop.permute.xlu0 %646
    %v648 = vlaneseq
    %v649 = vshrl.u32 %v648, 7
    %v650 = vadd.s32 %v649, 40
    %651 = vset.pattern.permute.xlu0 %v650
    %652 = vperm.xlu0 %651, %v617
    %v653 = vpop.permute.xlu0 %652
    %v654 = vlaneseq
    %v655 = vshrl.u32 %v654, 7
    %v656 = vadd.s32 %v655, 48
    %657 = vset.pattern.permute.xlu0 %v656
    %658 = vperm.xlu0 %657, %v617
    %v659 = vpop.permute.xlu0 %658
    %v660 = vlaneseq
    %v661 = vshrl.u32 %v660, 7
    %v662 = vadd.s32 %v661, 56
    %663 = vset.pattern.permute.xlu0 %v662
    %664 = vperm.xlu0 %663, %v617
    %v665 = vpop.permute.xlu0 %664
    %v682 = vmul.f32 %v564, %v574
    %v683 = vmul.f32 %v564, %v580
    %v684 = vmul.f32 %v564, %v586
    %v685 = vmul.f32 %v564, %v592
    %v686 = vmul.f32 %v564, %v598
    %v687 = vmul.f32 %v564, %v604
    %v688 = vmul.f32 %v564, %v610
    %v689 = vmul.f32 %v564, %v616
    %v690 = vmul.f32 %v565, %v623
    %v691 = vmul.f32 %v565, %v629
    %v692 = vmul.f32 %v565, %v635
    %v693 = vmul.f32 %v565, %v641
    %v694 = vmul.f32 %v565, %v647
    %v695 = vmul.f32 %v565, %v653
    %v696 = vmul.f32 %v565, %v659
    %v697 = vmul.f32 %v565, %v665
    %v698 = vadd.f32 %v544, %v682
    %v699 = vadd.f32 %v545, %v683
    %v700 = vadd.f32 %v546, %v684
    %v701 = vadd.f32 %v547, %v685
    %v702 = vadd.f32 %v548, %v686
    %v703 = vadd.f32 %v549, %v687
    %v704 = vadd.f32 %v550, %v688
    %v705 = vadd.f32 %v551, %v689
    %v706 = vadd.f32 %v552, %v690
    %v707 = vadd.f32 %v553, %v691
    %v708 = vadd.f32 %v554, %v692
    %v709 = vadd.f32 %v555, %v693
    %v710 = vadd.f32 %v556, %v694
    %v711 = vadd.f32 %v557, %v695
    %v712 = vadd.f32 %v558, %v696
    %v713 = vadd.f32 %v559, %v697
    %v714 = vperm.slane %v256, 3
    %v715 = vperm.slane %v257, 3
    %v716 = vperm.slane %v562, 3
    %v717 = vlaneseq
    %v718 = vshrl.u32 %v717, 7
    %720 = vset.pattern.permute.xlu0 %v718
    %721 = vperm.xlu0 %720, %v716
    %v722 = vpop.permute.xlu0 %721
    %v723 = vlaneseq
    %v724 = vshrl.u32 %v723, 7
    %v725 = vadd.s32 %v724, 8
    %726 = vset.pattern.permute.xlu0 %v725
    %727 = vperm.xlu0 %726, %v716
    %v728 = vpop.permute.xlu0 %727
    %v729 = vlaneseq
    %v730 = vshrl.u32 %v729, 7
    %v731 = vadd.s32 %v730, 16
    %732 = vset.pattern.permute.xlu0 %v731
    %733 = vperm.xlu0 %732, %v716
    %v734 = vpop.permute.xlu0 %733
    %v735 = vlaneseq
    %v736 = vshrl.u32 %v735, 7
    %v737 = vadd.s32 %v736, 24
    %738 = vset.pattern.permute.xlu0 %v737
    %739 = vperm.xlu0 %738, %v716
    %v740 = vpop.permute.xlu0 %739
    %v741 = vlaneseq
    %v742 = vshrl.u32 %v741, 7
    %v743 = vadd.s32 %v742, 32
    %744 = vset.pattern.permute.xlu0 %v743
    %745 = vperm.xlu0 %744, %v716
    %v746 = vpop.permute.xlu0 %745
    %v747 = vlaneseq
    %v748 = vshrl.u32 %v747, 7
    %v749 = vadd.s32 %v748, 40
    %750 = vset.pattern.permute.xlu0 %v749
    %751 = vperm.xlu0 %750, %v716
    %v752 = vpop.permute.xlu0 %751
    %v753 = vlaneseq
    %v754 = vshrl.u32 %v753, 7
    %v755 = vadd.s32 %v754, 48
    %756 = vset.pattern.permute.xlu0 %v755
    %757 = vperm.xlu0 %756, %v716
    %v758 = vpop.permute.xlu0 %757
    %v759 = vlaneseq
    %v760 = vshrl.u32 %v759, 7
    %v761 = vadd.s32 %v760, 56
    %762 = vset.pattern.permute.xlu0 %v761
    %763 = vperm.xlu0 %762, %v716
    %v764 = vpop.permute.xlu0 %763
    %v765 = vperm.slane %v563, 3
    %v766 = vlaneseq
    %v767 = vshrl.u32 %v766, 7
    %769 = vset.pattern.permute.xlu0 %v767
    %770 = vperm.xlu0 %769, %v765
    %v771 = vpop.permute.xlu0 %770
    %v772 = vlaneseq
    %v773 = vshrl.u32 %v772, 7
    %v774 = vadd.s32 %v773, 8
    %775 = vset.pattern.permute.xlu0 %v774
    %776 = vperm.xlu0 %775, %v765
    %v777 = vpop.permute.xlu0 %776
    %v778 = vlaneseq
    %v779 = vshrl.u32 %v778, 7
    %v780 = vadd.s32 %v779, 16
    %781 = vset.pattern.permute.xlu0 %v780
    %782 = vperm.xlu0 %781, %v765
    %v783 = vpop.permute.xlu0 %782
    %v784 = vlaneseq
    %v785 = vshrl.u32 %v784, 7
    %v786 = vadd.s32 %v785, 24
    %787 = vset.pattern.permute.xlu0 %v786
    %788 = vperm.xlu0 %787, %v765
    %v789 = vpop.permute.xlu0 %788
    %v790 = vlaneseq
    %v791 = vshrl.u32 %v790, 7
    %v792 = vadd.s32 %v791, 32
    %793 = vset.pattern.permute.xlu0 %v792
    %794 = vperm.xlu0 %793, %v765
    %v795 = vpop.permute.xlu0 %794
    %v796 = vlaneseq
    %v797 = vshrl.u32 %v796, 7
    %v798 = vadd.s32 %v797, 40
    %799 = vset.pattern.permute.xlu0 %v798
    %800 = vperm.xlu0 %799, %v765
    %v801 = vpop.permute.xlu0 %800
    %v802 = vlaneseq
    %v803 = vshrl.u32 %v802, 7
    %v804 = vadd.s32 %v803, 48
    %805 = vset.pattern.permute.xlu0 %v804
    %806 = vperm.xlu0 %805, %v765
    %v807 = vpop.permute.xlu0 %806
    %v808 = vlaneseq
    %v809 = vshrl.u32 %v808, 7
    %v810 = vadd.s32 %v809, 56
    %811 = vset.pattern.permute.xlu0 %v810
    %812 = vperm.xlu0 %811, %v765
    %v813 = vpop.permute.xlu0 %812
    %v830 = vmul.f32 %v714, %v722
    %v831 = vmul.f32 %v714, %v728
    %v832 = vmul.f32 %v714, %v734
    %v833 = vmul.f32 %v714, %v740
    %v834 = vmul.f32 %v714, %v746
    %v835 = vmul.f32 %v714, %v752
    %v836 = vmul.f32 %v714, %v758
    %v837 = vmul.f32 %v714, %v764
    %v838 = vmul.f32 %v715, %v771
    %v839 = vmul.f32 %v715, %v777
    %v840 = vmul.f32 %v715, %v783
    %v841 = vmul.f32 %v715, %v789
    %v842 = vmul.f32 %v715, %v795
    %v843 = vmul.f32 %v715, %v801
    %v844 = vmul.f32 %v715, %v807
    %v845 = vmul.f32 %v715, %v813
    %v846 = vadd.f32 %v698, %v830
    %v847 = vadd.f32 %v699, %v831
    %v848 = vadd.f32 %v700, %v832
    %v849 = vadd.f32 %v701, %v833
    %v850 = vadd.f32 %v702, %v834
    %v851 = vadd.f32 %v703, %v835
    %v852 = vadd.f32 %v704, %v836
    %v853 = vadd.f32 %v705, %v837
    %v854 = vadd.f32 %v706, %v838
    %v855 = vadd.f32 %v707, %v839
    %v856 = vadd.f32 %v708, %v840
    %v857 = vadd.f32 %v709, %v841
    %v858 = vadd.f32 %v710, %v842
    %v859 = vadd.f32 %v711, %v843
    %v860 = vadd.f32 %v712, %v844
    %v861 = vadd.f32 %v713, %v845
    %v862 = vld [vmem:[%s1] sm:$0x4]
    %v863 = vld [vmem:[%s1 + $0x4] sm:$0x4]
    %v864 = vunpack.c.l.bf16 %v862
    %v865 = vunpack.c.l.bf16 %v863
    %v866 = vperm.slane %v256, 4
    %v867 = vperm.slane %v257, 4
    %v870 = vperm.slane %v864, 4
    %v871 = vlaneseq
    %v872 = vshrl.u32 %v871, 7
    %874 = vset.pattern.permute.xlu0 %v872
    %875 = vperm.xlu0 %874, %v870
    %v876 = vpop.permute.xlu0 %875
    %v877 = vlaneseq
    %v878 = vshrl.u32 %v877, 7
    %v879 = vadd.s32 %v878, 8
    %880 = vset.pattern.permute.xlu0 %v879
    %881 = vperm.xlu0 %880, %v870
    %v882 = vpop.permute.xlu0 %881
    %v883 = vlaneseq
    %v884 = vshrl.u32 %v883, 7
    %v885 = vadd.s32 %v884, 16
    %886 = vset.pattern.permute.xlu0 %v885
    %887 = vperm.xlu0 %886, %v870
    %v888 = vpop.permute.xlu0 %887
    %v889 = vlaneseq
    %v890 = vshrl.u32 %v889, 7
    %v891 = vadd.s32 %v890, 24
    %892 = vset.pattern.permute.xlu0 %v891
    %893 = vperm.xlu0 %892, %v870
    %v894 = vpop.permute.xlu0 %893
    %v895 = vlaneseq
    %v896 = vshrl.u32 %v895, 7
    %v897 = vadd.s32 %v896, 32
    %898 = vset.pattern.permute.xlu0 %v897
    %899 = vperm.xlu0 %898, %v870
    %v900 = vpop.permute.xlu0 %899
    %v901 = vlaneseq
    %v902 = vshrl.u32 %v901, 7
    %v903 = vadd.s32 %v902, 40
    %904 = vset.pattern.permute.xlu0 %v903
    %905 = vperm.xlu0 %904, %v870
    %v906 = vpop.permute.xlu0 %905
    %v907 = vlaneseq
    %v908 = vshrl.u32 %v907, 7
    %v909 = vadd.s32 %v908, 48
    %910 = vset.pattern.permute.xlu0 %v909
    %911 = vperm.xlu0 %910, %v870
    %v912 = vpop.permute.xlu0 %911
    %v913 = vlaneseq
    %v914 = vshrl.u32 %v913, 7
    %v915 = vadd.s32 %v914, 56
    %916 = vset.pattern.permute.xlu0 %v915
    %917 = vperm.xlu0 %916, %v870
    %v918 = vpop.permute.xlu0 %917
    %v919 = vperm.slane %v865, 4
    %v920 = vlaneseq
    %v921 = vshrl.u32 %v920, 7
    %923 = vset.pattern.permute.xlu0 %v921
    %924 = vperm.xlu0 %923, %v919
    %v925 = vpop.permute.xlu0 %924
    %v926 = vlaneseq
    %v927 = vshrl.u32 %v926, 7
    %v928 = vadd.s32 %v927, 8
    %929 = vset.pattern.permute.xlu0 %v928
    %930 = vperm.xlu0 %929, %v919
    %v931 = vpop.permute.xlu0 %930
    %v932 = vlaneseq
    %v933 = vshrl.u32 %v932, 7
    %v934 = vadd.s32 %v933, 16
    %935 = vset.pattern.permute.xlu0 %v934
    %936 = vperm.xlu0 %935, %v919
    %v937 = vpop.permute.xlu0 %936
    %v938 = vlaneseq
    %v939 = vshrl.u32 %v938, 7
    %v940 = vadd.s32 %v939, 24
    %941 = vset.pattern.permute.xlu0 %v940
    %942 = vperm.xlu0 %941, %v919
    %v943 = vpop.permute.xlu0 %942
    %v944 = vlaneseq
    %v945 = vshrl.u32 %v944, 7
    %v946 = vadd.s32 %v945, 32
    %947 = vset.pattern.permute.xlu0 %v946
    %948 = vperm.xlu0 %947, %v919
    %v949 = vpop.permute.xlu0 %948
    %v950 = vlaneseq
    %v951 = vshrl.u32 %v950, 7
    %v952 = vadd.s32 %v951, 40
    %953 = vset.pattern.permute.xlu0 %v952
    %954 = vperm.xlu0 %953, %v919
    %v955 = vpop.permute.xlu0 %954
    %v956 = vlaneseq
    %v957 = vshrl.u32 %v956, 7
    %v958 = vadd.s32 %v957, 48
    %959 = vset.pattern.permute.xlu0 %v958
    %960 = vperm.xlu0 %959, %v919
    %v961 = vpop.permute.xlu0 %960
    %v962 = vlaneseq
    %v963 = vshrl.u32 %v962, 7
    %v964 = vadd.s32 %v963, 56
    %965 = vset.pattern.permute.xlu0 %v964
    %966 = vperm.xlu0 %965, %v919
    %v967 = vpop.permute.xlu0 %966
    %v984 = vmul.f32 %v866, %v876
    %v985 = vmul.f32 %v866, %v882
    %v986 = vmul.f32 %v866, %v888
    %v987 = vmul.f32 %v866, %v894
    %v988 = vmul.f32 %v866, %v900
    %v989 = vmul.f32 %v866, %v906
    %v990 = vmul.f32 %v866, %v912
    %v991 = vmul.f32 %v866, %v918
    %v992 = vmul.f32 %v867, %v925
    %v993 = vmul.f32 %v867, %v931
    %v994 = vmul.f32 %v867, %v937
    %v995 = vmul.f32 %v867, %v943
    %v996 = vmul.f32 %v867, %v949
    %v997 = vmul.f32 %v867, %v955
    %v998 = vmul.f32 %v867, %v961
    %v999 = vmul.f32 %v867, %v967
    %v1000 = vadd.f32 %v846, %v984
    %v1001 = vadd.f32 %v847, %v985
    %v1002 = vadd.f32 %v848, %v986
    %v1003 = vadd.f32 %v849, %v987
    %v1004 = vadd.f32 %v850, %v988
    %v1005 = vadd.f32 %v851, %v989
    %v1006 = vadd.f32 %v852, %v990
    %v1007 = vadd.f32 %v853, %v991
    %v1008 = vadd.f32 %v854, %v992
    %v1009 = vadd.f32 %v855, %v993
    %v1010 = vadd.f32 %v856, %v994
    %v1011 = vadd.f32 %v857, %v995
    %v1012 = vadd.f32 %v858, %v996
    %v1013 = vadd.f32 %v859, %v997
    %v1014 = vadd.f32 %v860, %v998
    %v1015 = vadd.f32 %v861, %v999
    %v1016 = vperm.slane %v256, 5
    %v1017 = vperm.slane %v257, 5
    %v1018 = vperm.slane %v864, 5
    %v1019 = vlaneseq
    %v1020 = vshrl.u32 %v1019, 7
    %1022 = vset.pattern.permute.xlu0 %v1020
    %1023 = vperm.xlu0 %1022, %v1018
    %v1024 = vpop.permute.xlu0 %1023
    %v1025 = vlaneseq
    %v1026 = vshrl.u32 %v1025, 7
    %v1027 = vadd.s32 %v1026, 8
    %1028 = vset.pattern.permute.xlu0 %v1027
    %1029 = vperm.xlu0 %1028, %v1018
    %v1030 = vpop.permute.xlu0 %1029
    %v1031 = vlaneseq
    %v1032 = vshrl.u32 %v1031, 7
    %v1033 = vadd.s32 %v1032, 16
    %1034 = vset.pattern.permute.xlu0 %v1033
    %1035 = vperm.xlu0 %1034, %v1018
    %v1036 = vpop.permute.xlu0 %1035
    %v1037 = vlaneseq
    %v1038 = vshrl.u32 %v1037, 7
    %v1039 = vadd.s32 %v1038, 24
    %1040 = vset.pattern.permute.xlu0 %v1039
    %1041 = vperm.xlu0 %1040, %v1018
    %v1042 = vpop.permute.xlu0 %1041
    %v1043 = vlaneseq
    %v1044 = vshrl.u32 %v1043, 7
    %v1045 = vadd.s32 %v1044, 32
    %1046 = vset.pattern.permute.xlu0 %v1045
    %1047 = vperm.xlu0 %1046, %v1018
    %v1048 = vpop.permute.xlu0 %1047
    %v1049 = vlaneseq
    %v1050 = vshrl.u32 %v1049, 7
    %v1051 = vadd.s32 %v1050, 40
    %1052 = vset.pattern.permute.xlu0 %v1051
    %1053 = vperm.xlu0 %1052, %v1018
    %v1054 = vpop.permute.xlu0 %1053
    %v1055 = vlaneseq
    %v1056 = vshrl.u32 %v1055, 7
    %v1057 = vadd.s32 %v1056, 48
    %1058 = vset.pattern.permute.xlu0 %v1057
    %1059 = vperm.xlu0 %1058, %v1018
    %v1060 = vpop.permute.xlu0 %1059
    %v1061 = vlaneseq
    %v1062 = vshrl.u32 %v1061, 7
    %v1063 = vadd.s32 %v1062, 56
    %1064 = vset.pattern.permute.xlu0 %v1063
    %1065 = vperm.xlu0 %1064, %v1018
    %v1066 = vpop.permute.xlu0 %1065
    %v1067 = vperm.slane %v865, 5
    %v1068 = vlaneseq
    %v1069 = vshrl.u32 %v1068, 7
    %1071 = vset.pattern.permute.xlu0 %v1069
    %1072 = vperm.xlu0 %1071, %v1067
    %v1073 = vpop.permute.xlu0 %1072
    %v1074 = vlaneseq
    %v1075 = vshrl.u32 %v1074, 7
    %v1076 = vadd.s32 %v1075, 8
    %1077 = vset.pattern.permute.xlu0 %v1076
    %1078 = vperm.xlu0 %1077, %v1067
    %v1079 = vpop.permute.xlu0 %1078
    %v1080 = vlaneseq
    %v1081 = vshrl.u32 %v1080, 7
    %v1082 = vadd.s32 %v1081, 16
    %1083 = vset.pattern.permute.xlu0 %v1082
    %1084 = vperm.xlu0 %1083, %v1067
    %v1085 = vpop.permute.xlu0 %1084
    %v1086 = vlaneseq
    %v1087 = vshrl.u32 %v1086, 7
    %v1088 = vadd.s32 %v1087, 24
    %1089 = vset.pattern.permute.xlu0 %v1088
    %1090 = vperm.xlu0 %1089, %v1067
    %v1091 = vpop.permute.xlu0 %1090
    %v1092 = vlaneseq
    %v1093 = vshrl.u32 %v1092, 7
    %v1094 = vadd.s32 %v1093, 32
    %1095 = vset.pattern.permute.xlu0 %v1094
    %1096 = vperm.xlu0 %1095, %v1067
    %v1097 = vpop.permute.xlu0 %1096
    %v1098 = vlaneseq
    %v1099 = vshrl.u32 %v1098, 7
    %v1100 = vadd.s32 %v1099, 40
    %1101 = vset.pattern.permute.xlu0 %v1100
    %1102 = vperm.xlu0 %1101, %v1067
    %v1103 = vpop.permute.xlu0 %1102
    %v1104 = vlaneseq
    %v1105 = vshrl.u32 %v1104, 7
    %v1106 = vadd.s32 %v1105, 48
    %1107 = vset.pattern.permute.xlu0 %v1106
    %1108 = vperm.xlu0 %1107, %v1067
    %v1109 = vpop.permute.xlu0 %1108
    %v1110 = vlaneseq
    %v1111 = vshrl.u32 %v1110, 7
    %v1112 = vadd.s32 %v1111, 56
    %1113 = vset.pattern.permute.xlu0 %v1112
    %1114 = vperm.xlu0 %1113, %v1067
    %v1115 = vpop.permute.xlu0 %1114
    %v1132 = vmul.f32 %v1016, %v1024
    %v1133 = vmul.f32 %v1016, %v1030
    %v1134 = vmul.f32 %v1016, %v1036
    %v1135 = vmul.f32 %v1016, %v1042
    %v1136 = vmul.f32 %v1016, %v1048
    %v1137 = vmul.f32 %v1016, %v1054
    %v1138 = vmul.f32 %v1016, %v1060
    %v1139 = vmul.f32 %v1016, %v1066
    %v1140 = vmul.f32 %v1017, %v1073
    %v1141 = vmul.f32 %v1017, %v1079
    %v1142 = vmul.f32 %v1017, %v1085
    %v1143 = vmul.f32 %v1017, %v1091
    %v1144 = vmul.f32 %v1017, %v1097
    %v1145 = vmul.f32 %v1017, %v1103
    %v1146 = vmul.f32 %v1017, %v1109
    %v1147 = vmul.f32 %v1017, %v1115
    %v1148 = vadd.f32 %v1000, %v1132
    %v1149 = vadd.f32 %v1001, %v1133
    %v1150 = vadd.f32 %v1002, %v1134
    %v1151 = vadd.f32 %v1003, %v1135
    %v1152 = vadd.f32 %v1004, %v1136
    %v1153 = vadd.f32 %v1005, %v1137
    %v1154 = vadd.f32 %v1006, %v1138
    %v1155 = vadd.f32 %v1007, %v1139
    %v1156 = vadd.f32 %v1008, %v1140
    %v1157 = vadd.f32 %v1009, %v1141
    %v1158 = vadd.f32 %v1010, %v1142
    %v1159 = vadd.f32 %v1011, %v1143
    %v1160 = vadd.f32 %v1012, %v1144
    %v1161 = vadd.f32 %v1013, %v1145
    %v1162 = vadd.f32 %v1014, %v1146
    %v1163 = vadd.f32 %v1015, %v1147
    %v1164 = vld [vmem:[%s1] sm:$0x8]
    %v1165 = vld [vmem:[%s1 + $0x4] sm:$0x8]
    %v1166 = vunpack.c.l.bf16 %v1164
    %v1167 = vunpack.c.l.bf16 %v1165
    %v1168 = vperm.slane %v256, 6
    %v1169 = vperm.slane %v257, 6
    %v1172 = vperm.slane %v1166, 6
    %v1173 = vlaneseq
    %v1174 = vshrl.u32 %v1173, 7
    %1176 = vset.pattern.permute.xlu0 %v1174
    %1177 = vperm.xlu0 %1176, %v1172
    %v1178 = vpop.permute.xlu0 %1177
    %v1179 = vlaneseq
    %v1180 = vshrl.u32 %v1179, 7
    %v1181 = vadd.s32 %v1180, 8
    %1182 = vset.pattern.permute.xlu0 %v1181
    %1183 = vperm.xlu0 %1182, %v1172
    %v1184 = vpop.permute.xlu0 %1183
    %v1185 = vlaneseq
    %v1186 = vshrl.u32 %v1185, 7
    %v1187 = vadd.s32 %v1186, 16
    %1188 = vset.pattern.permute.xlu0 %v1187
    %1189 = vperm.xlu0 %1188, %v1172
    %v1190 = vpop.permute.xlu0 %1189
    %v1191 = vlaneseq
    %v1192 = vshrl.u32 %v1191, 7
    %v1193 = vadd.s32 %v1192, 24
    %1194 = vset.pattern.permute.xlu0 %v1193
    %1195 = vperm.xlu0 %1194, %v1172
    %v1196 = vpop.permute.xlu0 %1195
    %v1197 = vlaneseq
    %v1198 = vshrl.u32 %v1197, 7
    %v1199 = vadd.s32 %v1198, 32
    %1200 = vset.pattern.permute.xlu0 %v1199
    %1201 = vperm.xlu0 %1200, %v1172
    %v1202 = vpop.permute.xlu0 %1201
    %v1203 = vlaneseq
    %v1204 = vshrl.u32 %v1203, 7
    %v1205 = vadd.s32 %v1204, 40
    %1206 = vset.pattern.permute.xlu0 %v1205
    %1207 = vperm.xlu0 %1206, %v1172
    %v1208 = vpop.permute.xlu0 %1207
    %v1209 = vlaneseq
    %v1210 = vshrl.u32 %v1209, 7
    %v1211 = vadd.s32 %v1210, 48
    %1212 = vset.pattern.permute.xlu0 %v1211
    %1213 = vperm.xlu0 %1212, %v1172
    %v1214 = vpop.permute.xlu0 %1213
    %v1215 = vlaneseq
    %v1216 = vshrl.u32 %v1215, 7
    %v1217 = vadd.s32 %v1216, 56
    %1218 = vset.pattern.permute.xlu0 %v1217
    %1219 = vperm.xlu0 %1218, %v1172
    %v1220 = vpop.permute.xlu0 %1219
    %v1221 = vperm.slane %v1167, 6
    %v1222 = vlaneseq
    %v1223 = vshrl.u32 %v1222, 7
    %1225 = vset.pattern.permute.xlu0 %v1223
    %1226 = vperm.xlu0 %1225, %v1221
    %v1227 = vpop.permute.xlu0 %1226
    %v1228 = vlaneseq
    %v1229 = vshrl.u32 %v1228, 7
    %v1230 = vadd.s32 %v1229, 8
    %1231 = vset.pattern.permute.xlu0 %v1230
    %1232 = vperm.xlu0 %1231, %v1221
    %v1233 = vpop.permute.xlu0 %1232
    %v1234 = vlaneseq
    %v1235 = vshrl.u32 %v1234, 7
    %v1236 = vadd.s32 %v1235, 16
    %1237 = vset.pattern.permute.xlu0 %v1236
    %1238 = vperm.xlu0 %1237, %v1221
    %v1239 = vpop.permute.xlu0 %1238
    %v1240 = vlaneseq
    %v1241 = vshrl.u32 %v1240, 7
    %v1242 = vadd.s32 %v1241, 24
    %1243 = vset.pattern.permute.xlu0 %v1242
    %1244 = vperm.xlu0 %1243, %v1221
    %v1245 = vpop.permute.xlu0 %1244
    %v1246 = vlaneseq
    %v1247 = vshrl.u32 %v1246, 7
    %v1248 = vadd.s32 %v1247, 32
    %1249 = vset.pattern.permute.xlu0 %v1248
    %1250 = vperm.xlu0 %1249, %v1221
    %v1251 = vpop.permute.xlu0 %1250
    %v1252 = vlaneseq
    %v1253 = vshrl.u32 %v1252, 7
    %v1254 = vadd.s32 %v1253, 40
    %1255 = vset.pattern.permute.xlu0 %v1254
    %1256 = vperm.xlu0 %1255, %v1221
    %v1257 = vpop.permute.xlu0 %1256
    %v1258 = vlaneseq
    %v1259 = vshrl.u32 %v1258, 7
    %v1260 = vadd.s32 %v1259, 48
    %1261 = vset.pattern.permute.xlu0 %v1260
    %1262 = vperm.xlu0 %1261, %v1221
    %v1263 = vpop.permute.xlu0 %1262
    %v1264 = vlaneseq
    %v1265 = vshrl.u32 %v1264, 7
    %v1266 = vadd.s32 %v1265, 56
    %1267 = vset.pattern.permute.xlu0 %v1266
    %1268 = vperm.xlu0 %1267, %v1221
    %v1269 = vpop.permute.xlu0 %1268
    %v1286 = vmul.f32 %v1168, %v1178
    %v1287 = vmul.f32 %v1168, %v1184
    %v1288 = vmul.f32 %v1168, %v1190
    %v1289 = vmul.f32 %v1168, %v1196
    %v1290 = vmul.f32 %v1168, %v1202
    %v1291 = vmul.f32 %v1168, %v1208
    %v1292 = vmul.f32 %v1168, %v1214
    %v1293 = vmul.f32 %v1168, %v1220
    %v1294 = vmul.f32 %v1169, %v1227
    %v1295 = vmul.f32 %v1169, %v1233
    %v1296 = vmul.f32 %v1169, %v1239
    %v1297 = vmul.f32 %v1169, %v1245
    %v1298 = vmul.f32 %v1169, %v1251
    %v1299 = vmul.f32 %v1169, %v1257
    %v1300 = vmul.f32 %v1169, %v1263
    %v1301 = vmul.f32 %v1169, %v1269
    %v1302 = vadd.f32 %v1148, %v1286
    %v1303 = vadd.f32 %v1149, %v1287
    %v1304 = vadd.f32 %v1150, %v1288
    %v1305 = vadd.f32 %v1151, %v1289
    %v1306 = vadd.f32 %v1152, %v1290
    %v1307 = vadd.f32 %v1153, %v1291
    %v1308 = vadd.f32 %v1154, %v1292
    %v1309 = vadd.f32 %v1155, %v1293
    %v1310 = vadd.f32 %v1156, %v1294
    %v1311 = vadd.f32 %v1157, %v1295
    %v1312 = vadd.f32 %v1158, %v1296
    %v1313 = vadd.f32 %v1159, %v1297
    %v1314 = vadd.f32 %v1160, %v1298
    %v1315 = vadd.f32 %v1161, %v1299
    %v1316 = vadd.f32 %v1162, %v1300
    %v1317 = vadd.f32 %v1163, %v1301
    %v1318 = vperm.slane %v256, 7
    %v1319 = vperm.slane %v257, 7
    %v1320 = vperm.slane %v1166, 7
    %v1321 = vlaneseq
    %v1322 = vshrl.u32 %v1321, 7
    %1324 = vset.pattern.permute.xlu0 %v1322
    %1325 = vperm.xlu0 %1324, %v1320
    %v1326 = vpop.permute.xlu0 %1325
    %v1327 = vlaneseq
    %v1328 = vshrl.u32 %v1327, 7
    %v1329 = vadd.s32 %v1328, 8
    %1330 = vset.pattern.permute.xlu0 %v1329
    %1331 = vperm.xlu0 %1330, %v1320
    %v1332 = vpop.permute.xlu0 %1331
    %v1333 = vlaneseq
    %v1334 = vshrl.u32 %v1333, 7
    %v1335 = vadd.s32 %v1334, 16
    %1336 = vset.pattern.permute.xlu0 %v1335
    %1337 = vperm.xlu0 %1336, %v1320
    %v1338 = vpop.permute.xlu0 %1337
    %v1339 = vlaneseq
    %v1340 = vshrl.u32 %v1339, 7
    %v1341 = vadd.s32 %v1340, 24
    %1342 = vset.pattern.permute.xlu0 %v1341
    %1343 = vperm.xlu0 %1342, %v1320
    %v1344 = vpop.permute.xlu0 %1343
    %v1345 = vlaneseq
    %v1346 = vshrl.u32 %v1345, 7
    %v1347 = vadd.s32 %v1346, 32
    %1348 = vset.pattern.permute.xlu0 %v1347
    %1349 = vperm.xlu0 %1348, %v1320
    %v1350 = vpop.permute.xlu0 %1349
    %v1351 = vlaneseq
    %v1352 = vshrl.u32 %v1351, 7
    %v1353 = vadd.s32 %v1352, 40
    %1354 = vset.pattern.permute.xlu0 %v1353
    %1355 = vperm.xlu0 %1354, %v1320
    %v1356 = vpop.permute.xlu0 %1355
    %v1357 = vlaneseq
    %v1358 = vshrl.u32 %v1357, 7
    %v1359 = vadd.s32 %v1358, 48
    %1360 = vset.pattern.permute.xlu0 %v1359
    %1361 = vperm.xlu0 %1360, %v1320
    %v1362 = vpop.permute.xlu0 %1361
    %v1363 = vlaneseq
    %v1364 = vshrl.u32 %v1363, 7
    %v1365 = vadd.s32 %v1364, 56
    %1366 = vset.pattern.permute.xlu0 %v1365
    %1367 = vperm.xlu0 %1366, %v1320
    %v1368 = vpop.permute.xlu0 %1367
    %v1369 = vperm.slane %v1167, 7
    %v1370 = vlaneseq
    %v1371 = vshrl.u32 %v1370, 7
    %1373 = vset.pattern.permute.xlu0 %v1371
    %1374 = vperm.xlu0 %1373, %v1369
    %v1375 = vpop.permute.xlu0 %1374
    %v1376 = vlaneseq
    %v1377 = vshrl.u32 %v1376, 7
    %v1378 = vadd.s32 %v1377, 8
    %1379 = vset.pattern.permute.xlu0 %v1378
    %1380 = vperm.xlu0 %1379, %v1369
    %v1381 = vpop.permute.xlu0 %1380
    %v1382 = vlaneseq
    %v1383 = vshrl.u32 %v1382, 7
    %v1384 = vadd.s32 %v1383, 16
    %1385 = vset.pattern.permute.xlu0 %v1384
    %1386 = vperm.xlu0 %1385, %v1369
    %v1387 = vpop.permute.xlu0 %1386
    %v1388 = vlaneseq
    %v1389 = vshrl.u32 %v1388, 7
    %v1390 = vadd.s32 %v1389, 24
    %1391 = vset.pattern.permute.xlu0 %v1390
    %1392 = vperm.xlu0 %1391, %v1369
    %v1393 = vpop.permute.xlu0 %1392
    %v1394 = vlaneseq
    %v1395 = vshrl.u32 %v1394, 7
    %v1396 = vadd.s32 %v1395, 32
    %1397 = vset.pattern.permute.xlu0 %v1396
    %1398 = vperm.xlu0 %1397, %v1369
    %v1399 = vpop.permute.xlu0 %1398
    %v1400 = vlaneseq
    %v1401 = vshrl.u32 %v1400, 7
    %v1402 = vadd.s32 %v1401, 40
    %1403 = vset.pattern.permute.xlu0 %v1402
    %1404 = vperm.xlu0 %1403, %v1369
    %v1405 = vpop.permute.xlu0 %1404
    %v1406 = vlaneseq
    %v1407 = vshrl.u32 %v1406, 7
    %v1408 = vadd.s32 %v1407, 48
    %1409 = vset.pattern.permute.xlu0 %v1408
    %1410 = vperm.xlu0 %1409, %v1369
    %v1411 = vpop.permute.xlu0 %1410
    %v1412 = vlaneseq
    %v1413 = vshrl.u32 %v1412, 7
    %v1414 = vadd.s32 %v1413, 56
    %1415 = vset.pattern.permute.xlu0 %v1414
    %1416 = vperm.xlu0 %1415, %v1369
    %v1417 = vpop.permute.xlu0 %1416
    %v1434 = vmul.f32 %v1318, %v1326
    %v1435 = vmul.f32 %v1318, %v1332
    %v1436 = vmul.f32 %v1318, %v1338
    %v1437 = vmul.f32 %v1318, %v1344
    %v1438 = vmul.f32 %v1318, %v1350
    %v1439 = vmul.f32 %v1318, %v1356
    %v1440 = vmul.f32 %v1318, %v1362
    %v1441 = vmul.f32 %v1318, %v1368
    %v1442 = vmul.f32 %v1319, %v1375
    %v1443 = vmul.f32 %v1319, %v1381
    %v1444 = vmul.f32 %v1319, %v1387
    %v1445 = vmul.f32 %v1319, %v1393
    %v1446 = vmul.f32 %v1319, %v1399
    %v1447 = vmul.f32 %v1319, %v1405
    %v1448 = vmul.f32 %v1319, %v1411
    %v1449 = vmul.f32 %v1319, %v1417
    %v1450 = vadd.f32 %v1302, %v1434
    %v1451 = vadd.f32 %v1303, %v1435
    %v1452 = vadd.f32 %v1304, %v1436
    %v1453 = vadd.f32 %v1305, %v1437
    %v1454 = vadd.f32 %v1306, %v1438
    %v1455 = vadd.f32 %v1307, %v1439
    %v1456 = vadd.f32 %v1308, %v1440
    %v1457 = vadd.f32 %v1309, %v1441
    %v1458 = vadd.f32 %v1310, %v1442
    %v1459 = vadd.f32 %v1311, %v1443
    %v1460 = vadd.f32 %v1312, %v1444
    %v1461 = vadd.f32 %v1313, %v1445
    %v1462 = vadd.f32 %v1314, %v1446
    %v1463 = vadd.f32 %v1315, %v1447
    %v1464 = vadd.f32 %v1316, %v1448
    %v1465 = vadd.f32 %v1317, %v1449
    %1482 = vset.pattern.permute.xlu0 0
    %1483 = vperm.xlu0 %1482, %v1450
    %v1484 = vpop.permute.xlu0 %1483
    %1485 = vset.pattern.permute.xlu0 0
    %1486 = vperm.xlu0 %1485, %v1451
    %v1487 = vpop.permute.xlu0 %1486
    %1488 = vset.pattern.permute.xlu0 0
    %1489 = vperm.xlu0 %1488, %v1452
    %v1490 = vpop.permute.xlu0 %1489
    %1491 = vset.pattern.permute.xlu0 0
    %1492 = vperm.xlu0 %1491, %v1453
    %v1493 = vpop.permute.xlu0 %1492
    %1494 = vset.pattern.permute.xlu0 0
    %1495 = vperm.xlu0 %1494, %v1454
    %v1496 = vpop.permute.xlu0 %1495
    %1497 = vset.pattern.permute.xlu0 0
    %1498 = vperm.xlu0 %1497, %v1455
    %v1499 = vpop.permute.xlu0 %1498
    %1500 = vset.pattern.permute.xlu0 0
    %1501 = vperm.xlu0 %1500, %v1456
    %v1502 = vpop.permute.xlu0 %1501
    %1503 = vset.pattern.permute.xlu0 0
    %1504 = vperm.xlu0 %1503, %v1457
    %v1505 = vpop.permute.xlu0 %1504
    %1506 = vset.pattern.permute.xlu0 0
    %1507 = vperm.xlu0 %1506, %v1458
    %v1508 = vpop.permute.xlu0 %1507
    %1509 = vset.pattern.permute.xlu0 0
    %1510 = vperm.xlu0 %1509, %v1459
    %v1511 = vpop.permute.xlu0 %1510
    %1512 = vset.pattern.permute.xlu0 0
    %1513 = vperm.xlu0 %1512, %v1460
    %v1514 = vpop.permute.xlu0 %1513
    %1515 = vset.pattern.permute.xlu0 0
    %1516 = vperm.xlu0 %1515, %v1461
    %v1517 = vpop.permute.xlu0 %1516
    %1518 = vset.pattern.permute.xlu0 0
    %1519 = vperm.xlu0 %1518, %v1462
    %v1520 = vpop.permute.xlu0 %1519
    %1521 = vset.pattern.permute.xlu0 0
    %1522 = vperm.xlu0 %1521, %v1463
    %v1523 = vpop.permute.xlu0 %1522
    %1524 = vset.pattern.permute.xlu0 0
    %1525 = vperm.xlu0 %1524, %v1464
    %v1526 = vpop.permute.xlu0 %1525
    %1527 = vset.pattern.permute.xlu0 0
    %1528 = vperm.xlu0 %1527, %v1465
    %v1529 = vpop.permute.xlu0 %1528
    %v1530 = vlaneseq
    %v1531 = vand.u32 %v1530, 127
    %v1532 = vperm.slane %v1484, %v1531
    %v1533 = vadd.s32 %v1531, 4294967288
    %v1534 = vperm.slane %v1487, %v1533
    %vm1535 = vcmask 130112
    %v1536 = vsel %vm1535, %v1534, %v1532
    %v1537 = vadd.s32 %v1531, 4294967280
    %v1538 = vperm.slane %v1490, %v1537
    %vm1539 = vcmask 195712
    %v1540 = vsel %vm1539, %v1538, %v1536
    %v1541 = vadd.s32 %v1531, 4294967272
    %v1542 = vperm.slane %v1493, %v1541
    %vm1543 = vcmask 261312
    %v1544 = vsel %vm1543, %v1542, %v1540
    %v1545 = vadd.s32 %v1531, 4294967264
    %v1546 = vperm.slane %v1496, %v1545
    %vm1547 = vcmask 326912
    %v1548 = vsel %vm1547, %v1546, %v1544
    %v1549 = vadd.s32 %v1531, 4294967256
    %v1550 = vperm.slane %v1499, %v1549
    %vm1551 = vcmask 392512
    %v1552 = vsel %vm1551, %v1550, %v1548
    %v1553 = vadd.s32 %v1531, 4294967248
    %v1554 = vperm.slane %v1502, %v1553
    %vm1555 = vcmask 458112
    %v1556 = vsel %vm1555, %v1554, %v1552
    %v1557 = vadd.s32 %v1531, 4294967240
    %v1558 = vperm.slane %v1505, %v1557
    %vm1559 = vcmask 523712
    %v1560 = vsel %vm1559, %v1558, %v1556
    %v1561 = vperm.slane %v1508, %v1531
    %v1562 = vperm.slane %v1511, %v1533
    %v1563 = vsel %vm1535, %v1562, %v1561
    %v1564 = vperm.slane %v1514, %v1537
    %v1565 = vsel %vm1539, %v1564, %v1563
    %v1566 = vperm.slane %v1517, %v1541
    %v1567 = vsel %vm1543, %v1566, %v1565
    %v1568 = vperm.slane %v1520, %v1545
    %v1569 = vsel %vm1547, %v1568, %v1567
    %v1570 = vperm.slane %v1523, %v1549
    %v1571 = vsel %vm1551, %v1570, %v1569
    %v1572 = vperm.slane %v1526, %v1553
    %v1573 = vsel %vm1555, %v1572, %v1571
    %v1574 = vperm.slane %v1529, %v1557
    %v1575 = vsel %vm1559, %v1574, %v1573
    %vm1576 = vcmask 1041409
    %v1577 = vsel %vm1576, %v1575, %v1560
    %vm1579 = vcmask 517120
    %1580 = vst.msk [vmem:[#allocation3] sm:$0x3] %vm1579, %v1577
    // Predicated region
    $region34: #{tpu_custom_call.1} parent=1 // pred_check
      _
    $region35: #{tpu_custom_call.1} parent=1 // pred_check_branch
      %1582 = sbr.rel (0) target = $region37
    $region36: #{tpu_custom_call.1} parent=1 // pred_region
      %1584 = vsyncadd [#allocation4], 0
      %s1586 = sshll.u32 [#allocation3], 4
      %s1587 = int_to_ptr.vmem [resolvable:$true] %s1586
      %s1588 = sshll.u32 %s8, 4
      %s1589 = int_to_ptr.hbm [resolvable:$true] %s1588
      %1591 = dma.vmem_to_hbm [thread:$0]  %s1587, 32, %s1589, [#allocation4]
    $region37: #{tpu_custom_call.1} parent=1 // pred_fallthru
      _
    // Predicated region
    $region38: #{tpu_custom_call.1} parent=1 // pred_check
      _
    $region39: #{tpu_custom_call.1} parent=1 // pred_check_branch
      %1593 = sbr.rel (0) target = $region41
    $region40: #{tpu_custom_call.1} parent=1 // pred_region
      %1595 = dma.done [#allocation4], 32
    $region41: #{tpu_custom_call.1} parent=1 // pred_fallthru
      _
    %1596 = vsyncpa [#allocation4], 1

</llo_original>
